<compile_context>
chip_gen: v7x
topology: tpu7x:2x2x1
jax: 0.10.0
libtpu: 0.0.40
codegen_flags: <defaults>
</compile_context>

<pallas_src>
import functools

import numpy as np
import jax
import jax.numpy as jnp
from jax.experimental import pallas as pl
from jax.experimental.pallas import tpu as pltpu


def biattention_kernel(v_ref, q_ref, wv_ref, bv_ref, wq_ref, bq_ref,
                       hmat_ref, hbias_ref, p_ref, logits_ref=None,
                       *, v_mask, mxu_dtype):
    Bb, V, Dv = v_ref.shape
    _, Q, Dq = q_ref.shape
    G, H3 = hmat_ref.shape
    VQ = V * Q

    v = v_ref[...]                                            # [Bb, V, Dv] bf16
    q = q_ref[...]                                            # [Bb, Q, Dq] bf16

    # FCNet: weight-normed Linear + ReLU on flattened row slabs (MXU M = Bb*V / Bb*Q).
    vp = jnp.maximum(
        jnp.dot(v.reshape(Bb * V, Dv), wv_ref[...],
                preferred_element_type=jnp.float32) + bv_ref[...], 0.0)   # [Bb*V, H3] f32
    qp = jnp.maximum(
        jnp.dot(q.reshape(Bb * Q, Dq), wq_ref[...],
                preferred_element_type=jnp.float32) + bq_ref[...], 0.0)   # [Bb*Q, H3] f32

    # Fold h_mat into the v projection in bf16 (BCNet: h_ = v_ * h_mat).
    hm = hmat_ref[...]                                        # [G, H3] bf16
    vh = (vp.astype(mxu_dtype).reshape(Bb, V, H3)[:, None, :, :]
          * hm[None, :, None, :])                             # [Bb, G, V, H3] bf16

    # One batched MXU contraction over H3 for all glimpses at once:
    #   lg[b, g*V + i, j] = sum_d vh[b,g,i,d] * qp[b,j,d]
    lg = jnp.einsum('bxd,bqd->bxq',
                    vh.reshape(Bb, G * V, H3),
                    qp.astype(mxu_dtype).reshape(Bb, Q, H3),
                    preferred_element_type=jnp.float32)       # [Bb, G*V, Q] f32

    lg = lg.reshape(Bb, G, V, Q) + hbias_ref[...][None, :, None, :]      # + h_bias[g]

    if v_mask:
        # mask objects whose feature vector is all zeros (matches masked_fill_(-inf));
        # exact zeros are preserved by the bf16 cast, so the test is unchanged.
        row_zero = (jnp.sum(jnp.abs(v).astype(jnp.float32), axis=2) == 0.0)   # [Bb, V]
        lg = jnp.where(row_zero[:, None, :, None],
                       jnp.asarray(-jnp.inf, lg.dtype), lg)

    # Lane-dense, v-major flattened layout [Bb, G, V*Q] -- this is exactly the
    # ordering of the module's logits.view(-1, glimpse, v_num*q_num), so the
    # wrapper only needs a contiguous (free) reshape back to [B, G, V, Q].
    lgf = lg.reshape(Bb, G, VQ)

    if logits_ref is not None:
        logits_ref[...] = lgf

    # softmax over the flattened V*Q set per (b, g).  (All-masked (b,g) slices
    # yield NaN, same as PyTorch softmax over all -inf.)
    m = jnp.max(lgf, axis=2, keepdims=True)                   # [Bb, G, 1]
    e = jnp.exp(lgf - m)
    s = jnp.sum(e, axis=2, keepdims=True)
    p_ref[...] = e * pl.reciprocal(s, approx=True)            # divide on the EUP


def _physical_vmem_bytes():
    try:
        return int(pltpu.get_tpu_info().vmem_capacity_bytes)
    except Exception:
        return 64 * 1024 * 1024       # conservative fallback (v7x per-TensorCore VMEM)


def _estimate_vmem_bytes(block_b, v_num, dv, q_num, dq, g, h3p, act_bytes, n_out):
    """Rough per-step VMEM footprint for the chosen tiling."""
    vq = v_num * q_num
    stream = 2 * block_b * (v_num * dv + q_num * dq) * act_bytes      # v/q blocks (double-buffered)
    outs = 2 * n_out * block_b * g * vq * 4                           # outputs (double-buffered)
    weights = ((dv + dq) * h3p * act_bytes                            # Wv, Wq (single-buffered)
               + 2 * h3p * 4                                          # bv, bq (f32)
               + g * h3p * act_bytes + g * 4)                         # h_mat (bf16), h_bias
    proj = block_b * (v_num + q_num) * h3p * 4                        # f32 FCNet outputs
    vh = block_b * g * v_num * h3p * act_bytes                        # folded v projection
    soft = 3 * block_b * g * vq * 4                                   # logits / exp / p live f32
    return stream + outs + weights + proj + vh + soft


def _pick_block_b(batch, v_num, dv, q_num, dq, g, h3p, act_bytes, n_out, budget):
    """Largest batch-block that fits the VMEM budget, preferring block_b*V filling
    256-row (v6e/v7x) or 128-row (v5e) MXU passes, with >= 2 grid steps when batch >= 2
    so v7x's two TensorCores both get work."""
    best = None
    for d in range(1, batch + 1):
        if batch % d:
            continue
        if batch >= 2 and (batch // d) < 2:
            continue
        if _estimate_vmem_bytes(d, v_num, dv, q_num, dq, g, h3p, act_bytes, n_out) > budget:
            continue
        rows = d * v_num
        score = ((2 if rows % 256 == 0 else 1 if rows % 128 == 0 else 0), d)
        if best is None or score > best[0]:
            best = (score, d)
    return 1 if best is None else best[1]


def biattention_forward(v, q, wv, bv, wq, bq, hmat, hbias, *, v_mask=True,
                        block_b=None, mxu_dtype=jnp.bfloat16, return_logits=True):
    """v: [B,V,Dv], q: [B,Q,Dq]; wv: [Dv,H3], bv: [1,H3]; wq: [Dq,H3], bq: [1,H3];
    hmat: [G,H3] (already weight-normed, dim=None); hbias: [G,1].
    Returns (p, logits), each [B, G, V, Q] (logits only when return_logits).
    Production callers that only need p should pass return_logits=False to halve
    HBM writeback."""
    B, V, Dv = v.shape
    Bq, Q, Dq = q.shape
    assert Bq == B
    G, H3 = hmat.shape
    VQ = V * Q

    # Lane-align the hidden dim: zero-pad H3 to a multiple of 128.  Padded weight /
    # bias / h_mat columns are zero -> ReLU(0)=0 -> no contribution to the logits.
    H3p = pl.cdiv(H3, 128) * 128
    if H3p != H3:
        padw = ((0, 0), (0, H3p - H3))
        wv, wq, bv, bq, hmat = (jnp.pad(a, padw) for a in (wv, wq, bv, bq, hmat))

    # MXU operands (weights, h_mat, activations) in bf16 with f32 accumulation;
    # biases / h_bias stay f32.
    act_bytes = jnp.dtype(mxu_dtype).itemsize
    v = v.astype(mxu_dtype)
    q = q.astype(mxu_dtype)
    wv = wv.astype(mxu_dtype)
    wq = wq.astype(mxu_dtype)
    hmat = hmat.astype(mxu_dtype)
    bv = bv.astype(jnp.float32)
    bq = bq.astype(jnp.float32)
    hbias = hbias.astype(jnp.float32)

    n_out = 2 if return_logits else 1
    phys_vmem = _physical_vmem_bytes()
    if block_b is None:
        block_b = _pick_block_b(B, V, Dv, Q, Dq, G, H3p, act_bytes, n_out,
                                budget=int(0.75 * phys_vmem))
    assert B % block_b == 0, "block_b must divide the batch"
    grid = (B // block_b,)

    need = _estimate_vmem_bytes(block_b, V, Dv, Q, Dq, G, H3p, act_bytes, n_out)
    vmem_limit = min(int(0.9 * phys_vmem), max(32 * 1024 * 1024, need + 8 * 1024 * 1024))

    kernel = functools.partial(biattention_kernel, v_mask=v_mask, mxu_dtype=mxu_dtype)
    batch3 = lambda i: (i, 0, 0)
    const2 = lambda i: (0, 0)
    single = pl.Buffered(1)     # constant-index residents: no double-buffer VMEM waste

    out_shape = [jax.ShapeDtypeStruct((B, G, VQ), jnp.float32)]          # p (lane-dense)
    out_specs = [pl.BlockSpec((block_b, G, VQ), batch3)]
    if return_logits:
        out_shape.append(jax.ShapeDtypeStruct((B, G, VQ), jnp.float32))
        out_specs.append(pl.BlockSpec((block_b, G, VQ), batch3))

    outs = pl.pallas_call(
        kernel,
        out_shape=tuple(out_shape),
        grid_spec=pltpu.PrefetchScalarGridSpec(
            num_scalar_prefetch=0,
            grid=grid,
            in_specs=[
                pl.BlockSpec((block_b, V, Dv), batch3),                         # v (bf16)
                pl.BlockSpec((block_b, Q, Dq), batch3),                         # q (bf16)
                pl.BlockSpec((Dv, H3p), const2, pipeline_mode=single),          # Wv (bf16)
                pl.BlockSpec((1, H3p), const2, pipeline_mode=single),           # bv (f32)
                pl.BlockSpec((Dq, H3p), const2, pipeline_mode=single),          # Wq (bf16)
                pl.BlockSpec((1, H3p), const2, pipeline_mode=single),           # bq (f32)
                pl.BlockSpec((G, H3p), const2, pipeline_mode=single),           # h_mat (bf16)
                pl.BlockSpec((G, 1), const2, pipeline_mode=single),             # h_bias (f32)
            ],
            out_specs=tuple(out_specs),
        ),
        compiler_params=pltpu.CompilerParams(
            dimension_semantics=("parallel",),       # independent batch blocks (megacore)
            vmem_limit_bytes=vmem_limit),
    )(v, q, wv, bv, wq, bq, hmat, hbias)

    # Kernel output is the module's own v-major flattening of (V, Q); this reshape is
    # contiguous (free) -- no transpose round-trip through HBM.
    unflat = lambda x: x.reshape(B, G, V, Q)
    if return_logits:
        p, logits = outs
        return unflat(p), unflat(logits)
    (p,) = outs
    return unflat(p)


if __name__ == "__main__":
    # Small shapes consistent with the module: x_dim=y_dim=z_dim=32, glimpse=4, k=3.
    B, V, Q = 2, 16, 8
    x_dim, y_dim, z_dim = 32, 32, 32
    glimpse, k = 4, 3
    H3 = z_dim * k                     # 96, zero-padded to 128 inside the wrapper

    key = jax.random.PRNGKey(0)
    ks = jax.random.split(key, 8)

    v = jax.random.normal(ks[0], (B, V, x_dim), jnp.float32)
    v = v.at[0, 3, :].set(0.0)         # an all-zero object row -> exercises v_mask
    q = jax.random.normal(ks[1], (B, Q, y_dim), jnp.float32)

    # Deterministic synthetic parameters (weight_norm with dim=None: W = g * V / ||V||_F).
    def weight_norm(w, g):
        return g * w / jnp.linalg.norm(w)

    Wv_v = jax.random.normal(ks[2], (H3, x_dim), jnp.float32) * 0.1      # PyTorch [out, in]
    bv = (jax.random.normal(ks[3], (H3,), jnp.float32) * 0.1).reshape(1, H3)
    Wq_v = jax.random.normal(ks[4], (H3, y_dim), jnp.float32) * 0.1
    bq = (jax.random.normal(ks[5], (H3,), jnp.float32) * 0.1).reshape(1, H3)
    hmat_v = jax.random.normal(ks[6], (1, glimpse, 1, H3), jnp.float32)  # BCNet.h_mat (pre-norm)
    hbias = jax.random.normal(ks[7], (1, glimpse, 1, 1), jnp.float32).reshape(glimpse, 1)

    g_v, g_q, g_h = jnp.float32(1.2), jnp.float32(0.8), jnp.float32(1.5)
    wv = weight_norm(Wv_v, g_v).T                      # [x_dim, H3]
    wq = weight_norm(Wq_v, g_q).T                      # [y_dim, H3]
    hmat = weight_norm(hmat_v, g_h).reshape(glimpse, H3)

    p, logits = biattention_forward(v, q, wv, bv, wq, bq, hmat, hbias, v_mask=True)
    jax.block_until_ready((p, logits))

    # Pure-JAX f32 reference.  The kernel uses bf16 MXU operands / activations (f32
    # accumulation) and an approximate reciprocal, so compare with relaxed tolerances.
    vp_ref = jax.nn.relu(v @ wv + bv[0])
    qp_ref = jax.nn.relu(q @ wq + bq[0])
    lg_ref = jnp.einsum('bvd,gd,bqd->bgvq', vp_ref, hmat, qp_ref) + hbias[None, :, :, None]
    mask = (jnp.sum(jnp.abs(v), axis=2) == 0.0)[:, None, :, None]
    lg_ref = jnp.where(mask, -jnp.inf, lg_ref)
    p_ref = jax.nn.softmax(lg_ref.reshape(B, glimpse, V * Q), axis=2).reshape(B, glimpse, V, Q)

    assert p.shape == (B, glimpse, V, Q) and logits.shape == (B, glimpse, V, Q)
    assert np.allclose(np.asarray(logits), np.asarray(lg_ref), rtol=2e-2, atol=5e-3)
    assert np.allclose(np.asarray(p), np.asarray(p_ref), rtol=2e-2, atol=1e-3)
    print("KERNEL_OK")
</pallas_src>

<mosaic_0001>
module attributes {stable_mosaic.version = 11 : i64} {
  func.func @biattention_kernel(%arg0: i32, %arg1: memref<1x16x32xbf16, #tpu.memory_space<vmem>>, %arg2: memref<1x8x32xbf16, #tpu.memory_space<vmem>>, %arg3: memref<32x128xbf16, #tpu.memory_space<vmem>>, %arg4: memref<1x128xf32, #tpu.memory_space<vmem>>, %arg5: memref<32x128xbf16, #tpu.memory_space<vmem>>, %arg6: memref<1x128xf32, #tpu.memory_space<vmem>>, %arg7: memref<4x128xbf16, #tpu.memory_space<vmem>>, %arg8: memref<4x1xf32, #tpu.memory_space<vmem>>, %arg9: memref<1x4x128xf32, #tpu.memory_space<vmem>>, %arg10: memref<1x4x128xf32, #tpu.memory_space<vmem>>) attributes {dimension_semantics = [#tpu.dimension_semantics<parallel>], iteration_bounds = array<i64: 2>, scalar_prefetch = 0 : i64, scratch_operands = 0 : i64, tpu.core_type = #tpu.core_type<tc>, window_params = [{transform_indices = @transform_0, window_bounds = array<i64: 1, 16, 32>}, {transform_indices = @transform_1, window_bounds = array<i64: 1, 8, 32>}, {pipeline_mode = #tpu.pipeline_mode<synchronous>, transform_indices = @transform_2, window_bounds = array<i64: 32, 128>}, {pipeline_mode = #tpu.pipeline_mode<synchronous>, transform_indices = @transform_3, window_bounds = array<i64: 1, 128>}, {pipeline_mode = #tpu.pipeline_mode<synchronous>, transform_indices = @transform_4, window_bounds = array<i64: 32, 128>}, {pipeline_mode = #tpu.pipeline_mode<synchronous>, transform_indices = @transform_5, window_bounds = array<i64: 1, 128>}, {pipeline_mode = #tpu.pipeline_mode<synchronous>, transform_indices = @transform_6, window_bounds = array<i64: 4, 128>}, {pipeline_mode = #tpu.pipeline_mode<synchronous>, transform_indices = @transform_7, window_bounds = array<i64: 4, 1>}, {transform_indices = @transform_8, window_bounds = array<i64: 1, 4, 128>}, {transform_indices = @transform_9, window_bounds = array<i64: 1, 4, 128>}]} {
    %c0 = arith.constant 0 : index
    %c0_0 = arith.constant 0 : index
    %c0_1 = arith.constant 0 : index
    %0 = vector.load %arg1[%c0, %c0_0, %c0_1] : memref<1x16x32xbf16, #tpu.memory_space<vmem>>, vector<1x16x32xbf16>
    %c0_2 = arith.constant 0 : index
    %c0_3 = arith.constant 0 : index
    %c0_4 = arith.constant 0 : index
    %1 = vector.load %arg2[%c0_2, %c0_3, %c0_4] : memref<1x8x32xbf16, #tpu.memory_space<vmem>>, vector<1x8x32xbf16>
    %2 = vector.shape_cast %0 : vector<1x16x32xbf16> to vector<16x32xbf16>
    %c0_5 = arith.constant 0 : index
    %c0_6 = arith.constant 0 : index
    %3 = vector.load %arg3[%c0_5, %c0_6] : memref<32x128xbf16, #tpu.memory_space<vmem>>, vector<32x128xbf16>
    %cst = arith.constant dense<0.000000e+00> : vector<16x128xf32>
    %4 = tpu.matmul %2, %3, %cst {dimension_numbers = #tpu.dot_dimension_numbers<[1], [0], [0], [1], [0, 0, 1, 1], [], []>} : vector<16x32xbf16>, vector<32x128xbf16>, vector<16x128xf32> -> vector<16x128xf32>
    %c0_7 = arith.constant 0 : index
    %c0_8 = arith.constant 0 : index
    %5 = vector.load %arg4[%c0_7, %c0_8] : memref<1x128xf32, #tpu.memory_space<vmem>>, vector<1x128xf32>
    %6 = vector.broadcast %5 : vector<1x128xf32> to vector<16x128xf32>
    %7 = arith.addf %4, %6 : vector<16x128xf32>
    %cst_9 = arith.constant 0.000000e+00 : f32
    %8 = vector.broadcast %cst_9 : f32 to vector<16x128xf32>
    %9 = arith.maximumf %7, %8 : vector<16x128xf32>
    %10 = vector.shape_cast %1 : vector<1x8x32xbf16> to vector<8x32xbf16>
    %c0_10 = arith.constant 0 : index
    %c0_11 = arith.constant 0 : index
    %11 = vector.load %arg5[%c0_10, %c0_11] : memref<32x128xbf16, #tpu.memory_space<vmem>>, vector<32x128xbf16>
    %cst_12 = arith.constant dense<0.000000e+00> : vector<8x128xf32>
    %12 = tpu.matmul %10, %11, %cst_12 {dimension_numbers = #tpu.dot_dimension_numbers<[1], [0], [0], [1], [0, 0, 1, 1], [], []>} : vector<8x32xbf16>, vector<32x128xbf16>, vector<8x128xf32> -> vector<8x128xf32>
    %c0_13 = arith.constant 0 : index
    %c0_14 = arith.constant 0 : index
    %13 = vector.load %arg6[%c0_13, %c0_14] : memref<1x128xf32, #tpu.memory_space<vmem>>, vector<1x128xf32>
    %14 = vector.broadcast %13 : vector<1x128xf32> to vector<8x128xf32>
    %15 = arith.addf %12, %14 : vector<8x128xf32>
    %cst_15 = arith.constant 0.000000e+00 : f32
    %16 = vector.broadcast %cst_15 : f32 to vector<8x128xf32>
    %17 = arith.maximumf %15, %16 : vector<8x128xf32>
    %c0_16 = arith.constant 0 : index
    %c0_17 = arith.constant 0 : index
    %18 = vector.load %arg7[%c0_16, %c0_17] : memref<4x128xbf16, #tpu.memory_space<vmem>>, vector<4x128xbf16>
    %19 = arith.truncf %9 : vector<16x128xf32> to vector<16x128xbf16>
    %20 = vector.shape_cast %19 : vector<16x128xbf16> to vector<1x16x128xbf16>
    %21 = vector.shape_cast %20 : vector<1x16x128xbf16> to vector<1x1x16x128xbf16>
    %22 = vector.shape_cast %18 : vector<4x128xbf16> to vector<1x4x1x128xbf16>
    %23 = vector.broadcast %21 : vector<1x1x16x128xbf16> to vector<1x4x16x128xbf16>
    %24 = vector.broadcast %22 : vector<1x4x1x128xbf16> to vector<1x4x16x128xbf16>
    %25 = arith.mulf %23, %24 : vector<1x4x16x128xbf16>
    %26 = vector.shape_cast %25 : vector<1x4x16x128xbf16> to vector<1x64x128xbf16>
    %27 = arith.truncf %17 : vector<8x128xf32> to vector<8x128xbf16>
    %28 = vector.shape_cast %27 : vector<8x128xbf16> to vector<1x8x128xbf16>
    "tpu.trace_start"() <{level = 10 : i32, message = "bxd,bqd->bxq"}> : () -> ()
    %cst_18 = arith.constant dense<0.000000e+00> : vector<1x64x8xf32>
    %29 = tpu.matmul %26, %28, %cst_18 {dimension_numbers = #tpu.dot_dimension_numbers<[2], [2], [1], [1], [0, 0, 0, 1, 1, 1], [0], [0]>} : vector<1x64x128xbf16>, vector<1x8x128xbf16>, vector<1x64x8xf32> -> vector<1x64x8xf32>
    "tpu.trace_stop"() : () -> ()
    %30 = vector.shape_cast %29 : vector<1x64x8xf32> to vector<1x4x16x8xf32>
    %c0_19 = arith.constant 0 : index
    %c0_20 = arith.constant 0 : index
    %31 = vector.load %arg8[%c0_19, %c0_20] : memref<4x1xf32, #tpu.memory_space<vmem>>, vector<4x1xf32>
    %32 = vector.shape_cast %31 : vector<4x1xf32> to vector<1x4x1x1xf32>
    %33 = vector.broadcast %32 : vector<1x4x1x1xf32> to vector<1x4x16x8xf32>
    %34 = arith.addf %30, %33 : vector<1x4x16x8xf32>
    %35 = math.absf %0 : vector<1x16x32xbf16>
    %36 = arith.extf %35 : vector<1x16x32xbf16> to vector<1x16x32xf32>
    %cst_21 = arith.constant dense<0.000000e+00> : vector<1x16xf32>
    %37 = vector.multi_reduction <add>, %36, %cst_21 [2] : vector<1x16x32xf32> to vector<1x16xf32>
    %cst_22 = arith.constant 0.000000e+00 : f32
    %38 = vector.broadcast %cst_22 : f32 to vector<1x16xf32>
    %39 = arith.cmpf oeq, %37, %38 : vector<1x16xf32>
    %40 = vector.shape_cast %39 : vector<1x16xi1> to vector<1x1x16x1xi1>
    %cst_23 = arith.constant 0xFF800000 : f32
    %41 = vector.shape_cast %40 : vector<1x1x16x1xi1> to vector<1x1x16x1xi1>
    %42 = vector.broadcast %41 : vector<1x1x16x1xi1> to vector<1x4x16x8xi1>
    %43 = vector.broadcast %cst_23 : f32 to vector<1x4x16x8xf32>
    %44 = arith.select %42, %43, %34 : vector<1x4x16x8xi1>, vector<1x4x16x8xf32>
    %45 = vector.shape_cast %44 : vector<1x4x16x8xf32> to vector<1x4x128xf32>
    %c0_24 = arith.constant 0 : index
    %c0_25 = arith.constant 0 : index
    %c0_26 = arith.constant 0 : index
    %46 = vector.load %arg10[%c0_24, %c0_25, %c0_26] : memref<1x4x128xf32, #tpu.memory_space<vmem>>, vector<1x4x128xf32>
    tpu.vector_store %arg10[%c0_24, %c0_25, %c0_26], %45 {strides = array<i32>} : memref<1x4x128xf32, #tpu.memory_space<vmem>>, vector<1x4x128xf32>,
    %cst_27 = arith.constant dense<0xFF800000> : vector<1x4xf32>
    %47 = vector.multi_reduction <maximumf>, %45, %cst_27 [2] : vector<1x4x128xf32> to vector<1x4xf32>
    %48 = vector.shape_cast %47 : vector<1x4xf32> to vector<1x4x1xf32>
    %49 = vector.broadcast %48 : vector<1x4x1xf32> to vector<1x4x128xf32>
    %50 = arith.subf %45, %49 : vector<1x4x128xf32>
    %51 = math.exp %50 : vector<1x4x128xf32>
    %cst_28 = arith.constant dense<0.000000e+00> : vector<1x4xf32>
    %52 = vector.multi_reduction <add>, %51, %cst_28 [2] : vector<1x4x128xf32> to vector<1x4xf32>
    %53 = vector.shape_cast %52 : vector<1x4xf32> to vector<1x4x1xf32>
    %54 = tpu.reciprocal %53 {approx = true} : vector<1x4x1xf32> -> vector<1x4x1xf32>
    %55 = vector.broadcast %54 : vector<1x4x1xf32> to vector<1x4x128xf32>
    %56 = arith.mulf %51, %55 : vector<1x4x128xf32>
    %c0_29 = arith.constant 0 : index
    %c0_30 = arith.constant 0 : index
    %c0_31 = arith.constant 0 : index
    %57 = vector.load %arg9[%c0_29, %c0_30, %c0_31] : memref<1x4x128xf32, #tpu.memory_space<vmem>>, vector<1x4x128xf32>
    tpu.vector_store %arg9[%c0_29, %c0_30, %c0_31], %56 {strides = array<i32>} : memref<1x4x128xf32, #tpu.memory_space<vmem>>, vector<1x4x128xf32>,
    return
  }
  func.func @transform_0(%arg0: i32) -> (i32, i32, i32) {
    %c0_i32 = arith.constant 0 : i32
    %c0_i32_0 = arith.constant 0 : i32
    %c0_i32_1 = arith.constant 0 : i32
    return %arg0, %c0_i32, %c0_i32_0 : i32, i32, i32
  }
  func.func @transform_1(%arg0: i32) -> (i32, i32, i32) {
    %c0_i32 = arith.constant 0 : i32
    %c0_i32_0 = arith.constant 0 : i32
    %c0_i32_1 = arith.constant 0 : i32
    return %arg0, %c0_i32, %c0_i32_0 : i32, i32, i32
  }
  func.func @transform_2(%arg0: i32) -> (i32, i32) {
    %c0_i32 = arith.constant 0 : i32
    %c0_i32_0 = arith.constant 0 : i32
    %c0_i32_1 = arith.constant 0 : i32
    return %c0_i32, %c0_i32_0 : i32, i32
  }
  func.func @transform_3(%arg0: i32) -> (i32, i32) {
    %c0_i32 = arith.constant 0 : i32
    %c0_i32_0 = arith.constant 0 : i32
    %c0_i32_1 = arith.constant 0 : i32
    return %c0_i32, %c0_i32_0 : i32, i32
  }
  func.func @transform_4(%arg0: i32) -> (i32, i32) {
    %c0_i32 = arith.constant 0 : i32
    %c0_i32_0 = arith.constant 0 : i32
    %c0_i32_1 = arith.constant 0 : i32
    return %c0_i32, %c0_i32_0 : i32, i32
  }
  func.func @transform_5(%arg0: i32) -> (i32, i32) {
    %c0_i32 = arith.constant 0 : i32
    %c0_i32_0 = arith.constant 0 : i32
    %c0_i32_1 = arith.constant 0 : i32
    return %c0_i32, %c0_i32_0 : i32, i32
  }
  func.func @transform_6(%arg0: i32) -> (i32, i32) {
    %c0_i32 = arith.constant 0 : i32
    %c0_i32_0 = arith.constant 0 : i32
    %c0_i32_1 = arith.constant 0 : i32
    return %c0_i32, %c0_i32_0 : i32, i32
  }
  func.func @transform_7(%arg0: i32) -> (i32, i32) {
    %c0_i32 = arith.constant 0 : i32
    %c0_i32_0 = arith.constant 0 : i32
    %c0_i32_1 = arith.constant 0 : i32
    return %c0_i32, %c0_i32_0 : i32, i32
  }
  func.func @transform_8(%arg0: i32) -> (i32, i32, i32) {
    %c0_i32 = arith.constant 0 : i32
    %c0_i32_0 = arith.constant 0 : i32
    %c0_i32_1 = arith.constant 0 : i32
    return %arg0, %c0_i32, %c0_i32_0 : i32, i32, i32
  }
  func.func @transform_9(%arg0: i32) -> (i32, i32, i32) {
    %c0_i32 = arith.constant 0 : i32
    %c0_i32_0 = arith.constant 0 : i32
    %c0_i32_1 = arith.constant 0 : i32
    return %arg0, %c0_i32, %c0_i32_0 : i32, i32, i32
  }
}

</mosaic_0001>

<llo_original>
// kernel: tpu_custom_call.1
$region0: #{tpu_custom_call.1}
  #allocation0 [shape = 'u32[]', space=smem, size = 0x4, offset = 0x4, fixed_abs, tag = 'smem constant byte address 0x4 - core index']
  #allocation1 [shape = 'u32[144,128]{1,0:T(1,128)}', space=vmem, size = 0x12000, scoped, tag = 'internal scratch']
  %s0 = inlined_call_operand.hbm [shape: bf16[2,16,32], index: 0, kind: input, shape index: {}]
  %s1 = inlined_call_operand.hbm [shape: bf16[2,8,32], index: 1, kind: input, shape index: {}]
  %s2 = inlined_call_operand.hbm [shape: bf16[32,128], index: 2, kind: input, shape index: {}]
  %s3 = inlined_call_operand.vmem [shape: f32[1,128], index: 3, kind: input, shape index: {}]
  %s4 = inlined_call_operand.vmem [shape: bf16[32,128], index: 4, kind: input, shape index: {}]
  %s5 = inlined_call_operand.vmem [shape: f32[1,128], index: 5, kind: input, shape index: {}]
  %s6 = inlined_call_operand.vmem [shape: bf16[4,128], index: 6, kind: input, shape index: {}]
  %s7 = inlined_call_operand.vmem [shape: f32[4,1], index: 7, kind: input, shape index: {}]
  %s8 = inlined_call_operand.hbm [shape: f32[2,4,128], index: 8, kind: output, shape index: {0}]
  %s9 = inlined_call_operand.hbm [shape: f32[2,4,128], index: 9, kind: output, shape index: {1}]
  %10 = xla_tuple %s8, %s9
  %s11 = sld [smem:[#allocation0]]
  $region85: #{tpu_custom_call.1} parent=0
    _
  %s13 = ssub.s32 1, %s11
  %s14 = scalar_select 0, %s13, %s11
  $region1: #{tpu_custom_call.1} parent=0
    #allocation2 [shape = 'u8[8192]{0}', space=vmem, size = 0x2000, scoped, tag = 'input window, operand 0']
    #allocation3 [shape = 's32[2]{0}', space=sflag, size = 0x8, scoped, tag = 'scoped memory for tpu_custom_call.1']
    #allocation4 [shape = 's32[2]{0}', space=sflag, size = 0x8, scoped, tag = 'scoped memory for tpu_custom_call.1']
    #allocation5 [shape = 'u8[4096]{0}', space=vmem, size = 0x1000, scoped, tag = 'input window, operand 1']
    #allocation6 [shape = 's32[2]{0}', space=sflag, size = 0x8, scoped, tag = 'scoped memory for tpu_custom_call.1']
    #allocation7 [shape = 'u8[8192]{0}', space=vmem, size = 0x2000, scoped, tag = 'input window, operand 2, single buffered']
    #allocation8 [shape = 'u8[4096]{0}', space=vmem, size = 0x1000, scoped, tag = 'output window, operand 0']
    #allocation9 [shape = 'u8[4096]{0}', space=vmem, size = 0x1000, scoped, tag = 'output window, operand 1']
    #allocation10 [shape = 's32[2]{0}', space=sflag, size = 0x8, scoped, tag = 'scoped memory for tpu_custom_call.1']
    %15 = vsyncpa [#allocation3], 0
    %s16 = scalar_lea.sflag [#allocation3], 1
    %17 = vsyncpa %s16, 0
    %18 = vsyncpa [#allocation6], 0
    %s19 = scalar_lea.sflag [#allocation6], 1
    %20 = vsyncpa %s19, 0
    %21 = vsyncpa [#allocation4], 0
    %s22 = scalar_lea.sflag [#allocation4], 1
    %23 = vsyncpa %s22, 0
    %24 = vsyncpa [#allocation10], 0
    %s25 = scalar_lea.sflag [#allocation10], 1
    %26 = vsyncpa %s25, 0
    loop: start=0, step=1, limit=4
    $region2: #{tpu_custom_call.1} parent=1 // loop_pre_header
      _
    $region3: #{tpu_custom_call.1} parent=1 // loop_header
      %s28 = sphi 0, %s32
      %p29 = scmp.ge.s32.totalorder %s28, 4
      %s38 = sphi 0, %s40
      %s41 = sphi 0, %s38
      %s42 = sphi 0, %s41
      %s58 = sphi 0, %s42
      %s64 = sphi 0, %s66
      %s67 = sphi 0, %s64
      %s68 = sphi 0, %s67
      %s84 = sphi 0, %s68
      %s88 = sphi 0, %s88
      %s90 = sphi 0, %s88
      %s91 = sphi 0, %s90
      %s105 = sphi 0, %s91
      %s109 = sphi 0, %s109
      %s111 = sphi 0, %s109
      %s112 = sphi 0, %s111
      %s126 = sphi 0, %s112
      %s130 = sphi 0, %s130
      %s132 = sphi 0, %s130
      %s133 = sphi 0, %s132
      %s147 = sphi 0, %s133
      %s151 = sphi 0, %s151
      %s153 = sphi 0, %s151
      %s154 = sphi 0, %s153
      %s168 = sphi 0, %s154
      %s172 = sphi 0, %s172
      %s174 = sphi 0, %s172
      %s175 = sphi 0, %s174
      %s189 = sphi 0, %s175
      %s193 = sphi 0, %s193
      %s195 = sphi 0, %s193
      %s196 = sphi 0, %s195
      %s210 = sphi 0, %s196
      %s216 = sphi 0, %s218
      %s219 = sphi 0, %s216
      %s220 = sphi 0, %s219
      %s236 = sphi 0, %s220
      %s242 = sphi 0, %s244
      %s245 = sphi 0, %s242
      %s246 = sphi 0, %s245
      %s262 = sphi 0, %s246
    $region4: #{tpu_custom_call.1} parent=1 // loop_header_branch
      %31 = sbr.rel (%p29) target = $region8
    $region5: #{tpu_custom_call.1} parent=1 // loop_body
      %s33 = ssub.s32 %s28, 1
      %s34 = ssub.s32 %s28, 2
      %s35 = sadd.s32 %s28, 1
      %s36 = ssub.s32 %s28, %s35
      %p37 = scmp.eq.s32.totalorder %s36, 0
      %s39 = sadd.s32 %s38, 1
      %s40 = scalar_select %p37, %s38, %s39
      %p43 = pneg %p37
      %p44 = scmp.eq.s32.totalorder %s28, 1
      %p45 = por %p43, %p44
      %p46 = scmp.ne.s32.totalorder %s38, %s41
      %p47 = scmp.eq.s32.totalorder %s28, 0
      %p48 = por %p46, %p47
      %p49 = scmp.ne.s32.totalorder %s38, %s41
      %p50 = scmp.eq.s32.totalorder %s33, 1
      %p51 = por %p49, %p50
      %p52 = scmp.ne.s32.totalorder %s41, %s42
      %p53 = scmp.eq.s32.totalorder %s33, 0
      %p54 = por %p52, %p53
      %p55 = scmp.ne.s32.totalorder %s41, %s42
      %p56 = scmp.eq.s32.totalorder %s34, 1
      %p57 = por %p55, %p56
      %p59 = scmp.ne.s32.totalorder %s42, %s58
      %p60 = scmp.eq.s32.totalorder %s34, 0
      %p61 = por %p59, %p60
      %s62 = ssub.s32 %s28, %s35
      %p63 = scmp.eq.s32.totalorder %s62, 0
      %s65 = sadd.s32 %s64, 1
      %s66 = scalar_select %p63, %s64, %s65
      %p69 = pneg %p63
      %p70 = scmp.eq.s32.totalorder %s28, 1
      %p71 = por %p69, %p70
      %p72 = scmp.ne.s32.totalorder %s64, %s67
      %p73 = scmp.eq.s32.totalorder %s28, 0
      %p74 = por %p72, %p73
      %p75 = scmp.ne.s32.totalorder %s64, %s67
      %p76 = scmp.eq.s32.totalorder %s33, 1
      %p77 = por %p75, %p76
      %p78 = scmp.ne.s32.totalorder %s67, %s68
      %p79 = scmp.eq.s32.totalorder %s33, 0
      %p80 = por %p78, %p79
      %p81 = scmp.ne.s32.totalorder %s67, %s68
      %p82 = scmp.eq.s32.totalorder %s34, 1
      %p83 = por %p81, %p82
      %p85 = scmp.ne.s32.totalorder %s68, %s84
      %p86 = scmp.eq.s32.totalorder %s34, 0
      %p87 = por %p85, %p86
      %s89 = sadd.s32 %s88, 1
      %p92 = scmp.eq.s32.totalorder %s28, 1
      %p93 = scmp.ne.s32.totalorder %s88, %s90
      %p94 = scmp.eq.s32.totalorder %s28, 0
      %p95 = por %p93, %p94
      %p96 = scmp.ne.s32.totalorder %s88, %s90
      %p97 = scmp.eq.s32.totalorder %s33, 1
      %p98 = por %p96, %p97
      %p99 = scmp.ne.s32.totalorder %s90, %s91
      %p100 = scmp.eq.s32.totalorder %s33, 0
      %p101 = por %p99, %p100
      %p102 = scmp.ne.s32.totalorder %s90, %s91
      %p103 = scmp.eq.s32.totalorder %s34, 1
      %p104 = por %p102, %p103
      %p106 = scmp.ne.s32.totalorder %s91, %s105
      %p107 = scmp.eq.s32.totalorder %s34, 0
      %p108 = por %p106, %p107
      %s110 = sadd.s32 %s109, 1
      %p113 = scmp.eq.s32.totalorder %s28, 1
      %p114 = scmp.ne.s32.totalorder %s109, %s111
      %p115 = scmp.eq.s32.totalorder %s28, 0
      %p116 = por %p114, %p115
      %p117 = scmp.ne.s32.totalorder %s109, %s111
      %p118 = scmp.eq.s32.totalorder %s33, 1
      %p119 = por %p117, %p118
      %p120 = scmp.ne.s32.totalorder %s111, %s112
      %p121 = scmp.eq.s32.totalorder %s33, 0
      %p122 = por %p120, %p121
      %p123 = scmp.ne.s32.totalorder %s111, %s112
      %p124 = scmp.eq.s32.totalorder %s34, 1
      %p125 = por %p123, %p124
      %p127 = scmp.ne.s32.totalorder %s112, %s126
      %p128 = scmp.eq.s32.totalorder %s34, 0
      %p129 = por %p127, %p128
      %s131 = sadd.s32 %s130, 1
      %p134 = scmp.eq.s32.totalorder %s28, 1
      %p135 = scmp.ne.s32.totalorder %s130, %s132
      %p136 = scmp.eq.s32.totalorder %s28, 0
      %p137 = por %p135, %p136
      %p138 = scmp.ne.s32.totalorder %s130, %s132
      %p139 = scmp.eq.s32.totalorder %s33, 1
      %p140 = por %p138, %p139
      %p141 = scmp.ne.s32.totalorder %s132, %s133
      %p142 = scmp.eq.s32.totalorder %s33, 0
      %p143 = por %p141, %p142
      %p144 = scmp.ne.s32.totalorder %s132, %s133
      %p145 = scmp.eq.s32.totalorder %s34, 1
      %p146 = por %p144, %p145
      %p148 = scmp.ne.s32.totalorder %s133, %s147
      %p149 = scmp.eq.s32.totalorder %s34, 0
      %p150 = por %p148, %p149
      %s152 = sadd.s32 %s151, 1
      %p155 = scmp.eq.s32.totalorder %s28, 1
      %p156 = scmp.ne.s32.totalorder %s151, %s153
      %p157 = scmp.eq.s32.totalorder %s28, 0
      %p158 = por %p156, %p157
      %p159 = scmp.ne.s32.totalorder %s151, %s153
      %p160 = scmp.eq.s32.totalorder %s33, 1
      %p161 = por %p159, %p160
      %p162 = scmp.ne.s32.totalorder %s153, %s154
      %p163 = scmp.eq.s32.totalorder %s33, 0
      %p164 = por %p162, %p163
      %p165 = scmp.ne.s32.totalorder %s153, %s154
      %p166 = scmp.eq.s32.totalorder %s34, 1
      %p167 = por %p165, %p166
      %p169 = scmp.ne.s32.totalorder %s154, %s168
      %p170 = scmp.eq.s32.totalorder %s34, 0
      %p171 = por %p169, %p170
      %s173 = sadd.s32 %s172, 1
      %p176 = scmp.eq.s32.totalorder %s28, 1
      %p177 = scmp.ne.s32.totalorder %s172, %s174
      %p178 = scmp.eq.s32.totalorder %s28, 0
      %p179 = por %p177, %p178
      %p180 = scmp.ne.s32.totalorder %s172, %s174
      %p181 = scmp.eq.s32.totalorder %s33, 1
      %p182 = por %p180, %p181
      %p183 = scmp.ne.s32.totalorder %s174, %s175
      %p184 = scmp.eq.s32.totalorder %s33, 0
      %p185 = por %p183, %p184
      %p186 = scmp.ne.s32.totalorder %s174, %s175
      %p187 = scmp.eq.s32.totalorder %s34, 1
      %p188 = por %p186, %p187
      %p190 = scmp.ne.s32.totalorder %s175, %s189
      %p191 = scmp.eq.s32.totalorder %s34, 0
      %p192 = por %p190, %p191
      %s194 = sadd.s32 %s193, 1
      %p197 = scmp.eq.s32.totalorder %s28, 1
      %p198 = scmp.ne.s32.totalorder %s193, %s195
      %p199 = scmp.eq.s32.totalorder %s28, 0
      %p200 = por %p198, %p199
      %p201 = scmp.ne.s32.totalorder %s193, %s195
      %p202 = scmp.eq.s32.totalorder %s33, 1
      %p203 = por %p201, %p202
      %p204 = scmp.ne.s32.totalorder %s195, %s196
      %p205 = scmp.eq.s32.totalorder %s33, 0
      %p206 = por %p204, %p205
      %p207 = scmp.ne.s32.totalorder %s195, %s196
      %p208 = scmp.eq.s32.totalorder %s34, 1
      %p209 = por %p207, %p208
      %p211 = scmp.ne.s32.totalorder %s196, %s210
      %p212 = scmp.eq.s32.totalorder %s34, 0
      %p213 = por %p211, %p212
      %s214 = ssub.s32 %s28, %s35
      %p215 = scmp.eq.s32.totalorder %s214, 0
      %s217 = sadd.s32 %s216, 1
      %s218 = scalar_select %p215, %s216, %s217
      %p221 = pneg %p215
      %p222 = scmp.eq.s32.totalorder %s28, 1
      %p223 = por %p221, %p222
      %p224 = scmp.ne.s32.totalorder %s216, %s219
      %p225 = scmp.eq.s32.totalorder %s28, 0
      %p226 = por %p224, %p225
      %p227 = scmp.ne.s32.totalorder %s216, %s219
      %p228 = scmp.eq.s32.totalorder %s33, 1
      %p229 = por %p227, %p228
      %p230 = scmp.ne.s32.totalorder %s219, %s220
      %p231 = scmp.eq.s32.totalorder %s33, 0
      %p232 = por %p230, %p231
      %p233 = scmp.ne.s32.totalorder %s219, %s220
      %p234 = scmp.eq.s32.totalorder %s34, 1
      %p235 = por %p233, %p234
      %p237 = scmp.ne.s32.totalorder %s220, %s236
      %p238 = scmp.eq.s32.totalorder %s34, 0
      %p239 = por %p237, %p238
      %s240 = ssub.s32 %s28, %s35
      %p241 = scmp.eq.s32.totalorder %s240, 0
      %s243 = sadd.s32 %s242, 1
      %s244 = scalar_select %p241, %s242, %s243
      %p247 = pneg %p241
      %p248 = scmp.eq.s32.totalorder %s28, 1
      %p249 = por %p247, %p248
      %p250 = scmp.ne.s32.totalorder %s242, %s245
      %p251 = scmp.eq.s32.totalorder %s28, 0
      %p252 = por %p250, %p251
      %p253 = scmp.ne.s32.totalorder %s242, %s245
      %p254 = scmp.eq.s32.totalorder %s33, 1
      %p255 = por %p253, %p254
      %p256 = scmp.ne.s32.totalorder %s245, %s246
      %p257 = scmp.eq.s32.totalorder %s33, 0
      %p258 = por %p256, %p257
      %p259 = scmp.ne.s32.totalorder %s245, %s246
      %p260 = scmp.eq.s32.totalorder %s34, 1
      %p261 = por %p259, %p260
      %p263 = scmp.ne.s32.totalorder %s246, %s262
      %p264 = scmp.eq.s32.totalorder %s34, 0
      %p265 = por %p263, %p264
      %p266 = scmp.le.s32.totalorder 1, %s28
      %p267 = scmp.lt.s32.totalorder %s28, 3
      %p268 = pnand %p266, %p267
      %p269 = pneg %p268
      // Predicated region
      $region9: #{tpu_custom_call.1} parent=5 // pred_check
        _
      $region10: #{tpu_custom_call.1} parent=5 // pred_check_branch
        %271 = sbr.rel (%p268) target = $region12
      $region11: #{tpu_custom_call.1} parent=5 // pred_region
        %s272 = ssub.s32 %s28, 1
        // Predicated region
        $region13: #{tpu_custom_call.1} parent=11 // pred_check
          %p273 = pneg %p101
        $region14: #{tpu_custom_call.1} parent=11 // pred_check_branch
          %275 = sbr.rel (%p273) target = $region16
        $region15: #{tpu_custom_call.1} parent=11 // pred_region
          %s277 = ssub.s32 256, 256
          %278 = vsyncadd [#allocation6], %s277
          %s279 = sshll.u32 [#allocation7], 4
          %s280 = int_to_ptr.vmem [resolvable:$true] %s279
          %285 = dma.hbm_to_vmem [thread:$0]  %s2, 256, %s280, [#allocation6], 64, 64, 4
        $region16: #{tpu_custom_call.1} parent=11 // pred_fallthru
          _
        // Predicated region
        $region17: #{tpu_custom_call.1} parent=11 // pred_check
          %p286 = pneg %p122
        $region18: #{tpu_custom_call.1} parent=11 // pred_check_branch
          %288 = sbr.rel (%p286) target = $region20
        $region19: #{tpu_custom_call.1} parent=11 // pred_region
          _
        $region20: #{tpu_custom_call.1} parent=11 // pred_fallthru
          _
        // Predicated region
        $region21: #{tpu_custom_call.1} parent=11 // pred_check
          %p289 = pneg %p143
        $region22: #{tpu_custom_call.1} parent=11 // pred_check_branch
          %291 = sbr.rel (%p289) target = $region24
        $region23: #{tpu_custom_call.1} parent=11 // pred_region
          _
        $region24: #{tpu_custom_call.1} parent=11 // pred_fallthru
          _
        // Predicated region
        $region25: #{tpu_custom_call.1} parent=11 // pred_check
          %p292 = pneg %p164
        $region26: #{tpu_custom_call.1} parent=11 // pred_check_branch
          %294 = sbr.rel (%p292) target = $region28
        $region27: #{tpu_custom_call.1} parent=11 // pred_region
          _
        $region28: #{tpu_custom_call.1} parent=11 // pred_fallthru
          _
        // Predicated region
        $region29: #{tpu_custom_call.1} parent=11 // pred_check
          %p295 = pneg %p185
        $region30: #{tpu_custom_call.1} parent=11 // pred_check_branch
          %297 = sbr.rel (%p295) target = $region32
        $region31: #{tpu_custom_call.1} parent=11 // pred_region
          _
        $region32: #{tpu_custom_call.1} parent=11 // pred_fallthru
          _
        // Predicated region
        $region33: #{tpu_custom_call.1} parent=11 // pred_check
          %p298 = pneg %p206
        $region34: #{tpu_custom_call.1} parent=11 // pred_check_branch
          %300 = sbr.rel (%p298) target = $region36
        $region35: #{tpu_custom_call.1} parent=11 // pred_region
          _
        $region36: #{tpu_custom_call.1} parent=11 // pred_fallthru
          _
      $region12: #{tpu_custom_call.1} parent=5 // pred_fallthru
        _
      %p301 = scmp.lt.s32.totalorder %s28, 2
      // Predicated region
      $region37: #{tpu_custom_call.1} parent=5 // pred_check
        %p302 = pneg %p301
      $region38: #{tpu_custom_call.1} parent=5 // pred_check_branch
        %304 = sbr.rel (%p302) target = $region40
      $region39: #{tpu_custom_call.1} parent=5 // pred_region
        // Predicated region
        $region41: #{tpu_custom_call.1} parent=39 // pred_check
          %p305 = pneg %p48
        $region42: #{tpu_custom_call.1} parent=39 // pred_check_branch
          %307 = sbr.rel (%p305) target = $region44
        $region43: #{tpu_custom_call.1} parent=39 // pred_region
          %s308 = sand.u32 %s38, 1
          %s309 = scalar_lea.sflag [#allocation3], %s308
          %s310 = sand.u32 %s38, 1
          %s311 = smul.addr %s310, 8
          %s312 = scalar_lea.vmem [#allocation2], %s311
          %s314 = ssub.s32 128, 128
          %315 = vsyncadd %s309, %s314
          %s316 = smul.addr %s28, 2
          %s317 = smul.addr %s316, 64
          %s318 = scalar_lea.hbm %s0, %s317
          %s319 = sshll.u32 %s312, 4
          %s320 = int_to_ptr.vmem [resolvable:$true] %s319
          %325 = dma.hbm_to_vmem [thread:$0]  %s318, 128, %s320, %s309, 64, 64, 4
        $region44: #{tpu_custom_call.1} parent=39 // pred_fallthru
          _
        // Predicated region
        $region45: #{tpu_custom_call.1} parent=39 // pred_check
          %p326 = pneg %p74
        $region46: #{tpu_custom_call.1} parent=39 // pred_check_branch
          %328 = sbr.rel (%p326) target = $region48
        $region47: #{tpu_custom_call.1} parent=39 // pred_region
          %s329 = sand.u32 %s28, 1
          %s330 = scalar_lea.sflag [#allocation6], %s329
          %s331 = sand.u32 %s64, 1
          %s332 = smul.addr %s331, 4
          %s333 = scalar_lea.vmem [#allocation5], %s332
          %s335 = ssub.s32 64, 64
          %336 = vsyncadd %s330, %s335
          %s337 = smul.addr %s28, 64
          %s338 = scalar_lea.hbm %s1, %s337
          %s340 = sshll.u32 %s333, 4
          %s341 = int_to_ptr.vmem [resolvable:$true] %s340
          %343 = dma.hbm_to_vmem [thread:$0]  %s338, 64, %s341, %s330
        $region48: #{tpu_custom_call.1} parent=39 // pred_fallthru
          _
      $region40: #{tpu_custom_call.1} parent=5 // pred_fallthru
        _
      %p344 = scmp.le.s32.totalorder 1, %s28
      %p345 = scmp.lt.s32.totalorder %s28, 3
      %p346 = pnand %p344, %p345
      %p347 = pneg %p346
      // Predicated region
      $region49: #{tpu_custom_call.1} parent=5 // pred_check
        _
      $region50: #{tpu_custom_call.1} parent=5 // pred_check_branch
        %349 = sbr.rel (%p346) target = $region52
      $region51: #{tpu_custom_call.1} parent=5 // pred_region
        %s350 = ssub.s32 %s28, 1
        %s351 = sand.u32 %s41, 1
        %s352 = scalar_lea.sflag [#allocation3], %s351
        %s353 = sand.u32 %s41, 1
        %s354 = smul.addr %s353, 8
        %s355 = scalar_lea.vmem [#allocation2], %s354
        // Predicated region
        $region53: #{tpu_custom_call.1} parent=51 // pred_check
          %p356 = pneg %p54
        $region54: #{tpu_custom_call.1} parent=51 // pred_check_branch
          %358 = sbr.rel (%p356) target = $region56
        $region55: #{tpu_custom_call.1} parent=51 // pred_region
          %359 = dma.done %s352, 128
        $region56: #{tpu_custom_call.1} parent=51 // pred_fallthru
          _
        %s360 = sand.u32 %s33, 1
        %s361 = scalar_lea.sflag [#allocation6], %s360
        %s362 = sand.u32 %s67, 1
        %s363 = smul.addr %s362, 4
        %s364 = scalar_lea.vmem [#allocation5], %s363
        // Predicated region
        $region57: #{tpu_custom_call.1} parent=51 // pred_check
          %p365 = pneg %p80
        $region58: #{tpu_custom_call.1} parent=51 // pred_check_branch
          %367 = sbr.rel (%p365) target = $region60
        $region59: #{tpu_custom_call.1} parent=51 // pred_region
          %368 = dma.done %s361, 64
        $region60: #{tpu_custom_call.1} parent=51 // pred_fallthru
          _
        // Predicated region
        $region61: #{tpu_custom_call.1} parent=51 // pred_check
          %p369 = pneg %p101
        $region62: #{tpu_custom_call.1} parent=51 // pred_check_branch
          %371 = sbr.rel (%p369) target = $region64
        $region63: #{tpu_custom_call.1} parent=51 // pred_region
          %372 = dma.done [#allocation6], 256
        $region64: #{tpu_custom_call.1} parent=51 // pred_fallthru
          _
        %s373 = sand.u32 %s41, 1
        %s374 = scalar_lea.sflag [#allocation3], %s373
        %s375 = sand.u32 %s41, 1
        %s376 = smul.addr %s375, 8
        %s377 = scalar_lea.vmem [#allocation2], %s376
        %p378 = pneg %p54
        %p379 = pneg %p51
        %s380 = sand.u32 %s33, 1
        %s381 = scalar_lea.sflag [#allocation6], %s380
        %s382 = sand.u32 %s67, 1
        %s383 = smul.addr %s382, 4
        %s384 = scalar_lea.vmem [#allocation5], %s383
        %p385 = pneg %p80
        %p386 = pneg %p77
        %p387 = pneg %p101
        %p388 = pneg %p98
        %p389 = pneg %p122
        %p390 = pneg %p119
        %p391 = pneg %p143
        %p392 = pneg %p140
        %p393 = pneg %p164
        %p394 = pneg %p161
        %p395 = pneg %p185
        %p396 = pneg %p182
        %p397 = pneg %p206
        %p398 = pneg %p203
        %p399 = pneg %p232
        %p400 = pneg %p229
        %s401 = sand.u32 %s219, 1
        %s402 = scalar_lea.sflag [#allocation4], %s401
        %s403 = sand.u32 %s219, 1
        %s404 = smul.addr %s403, 4
        %s405 = scalar_lea.vmem [#allocation8], %s404
        %p406 = pneg %p258
        %p407 = pneg %p255
        %s408 = sand.u32 %s245, 1
        %s409 = scalar_lea.sflag [#allocation10], %s408
        %s410 = sand.u32 %s245, 1
        %s411 = smul.addr %s410, 4
        %s412 = scalar_lea.vmem [#allocation9], %s411
        %v414 = vld [vmem:[%s355] sm:$0xf]
        %v415 = vld [vmem:[%s355 + $0x4] sm:$0xf]
        %v416 = vld [vmem:[%s364] sm:$0xf]
        %v417 = vld [vmem:[#allocation7] sm:$0xf]
        %v418 = vld [vmem:[#allocation7 + $0x4] sm:$0xf]
        %v419 = vld [vmem:[#allocation7 + $0x8] sm:$0xf]
        %v420 = vld [vmem:[#allocation7 + $0xc] sm:$0xf]
        %v421 = vld [vmem:[%s3] sm:$0x1]
        %v423 = vlaneseq
        %v424 = vshrl.u32 %v423, 7
        %v425 = vsub.s32 0, %v424
        %v426 = vrot.slane %v421, %v425
        %v430 = vunpack.c.l.b16 %v414
        %v431 = vunpack.c.l.b16 %v415
        %v432 = vpack.c.b16 %v431, %v430
        %v437 = vunpack.c.l.b16 %v417
        %v438 = vunpack.c.l.b16 %v418
        %v439 = vunpack.c.l.b16 %v419
        %v440 = vunpack.c.l.b16 %v420
        %v441 = vpack.c.b16 %v438, %v437
        %v442 = vpack.c.b16 %v440, %v439
        %vm445 = vcmask 261120
        %v447 = vsel %vm445, %v432, 0
        %449 = vmatprep.subr.bf16.mxu0 0
        %450 = vmatpush1.bf16.msra.mxu0 %v441
        %451 = vmatprep.subr.bf16.mxu0 0
        %452 = vmatpush1.bf16.msra.mxu0 %v442
        %453 = vmatprep.subr.bf16.mxu0 0
        %454 = vmatpush1.bf16.msra.mxu0 0
        %455 = vmatprep.subr.bf16.mxu0 0
        %456 = vmatpush1.bf16.msra.mxu0 0
        %457 = vmatprep.subr.bf16.mxu0 0
        %458 = vmatpush1.bf16.msra.mxu0 0
        %459 = vmatprep.subr.bf16.mxu0 0
        %460 = vmatpush1.bf16.msra.mxu0 0
        %461 = vmatprep.subr.bf16.mxu0 0
        %462 = vmatpush1.bf16.msra.mxu0 0
        %463 = vmatprep.subr.bf16.mxu0 0
        %464 = vmatpush1.bf16.msra.mxu0 0
        %465 = vmatprep.subr.bf16.mxu0 0
        %466 = vmatpush1.bf16.msra.mxu0 0
        %467 = vmatprep.subr.bf16.mxu0 0
        %468 = vmatpush1.bf16.msra.mxu0 0
        %469 = vmatprep.subr.bf16.mxu0 0
        %470 = vmatpush1.bf16.msra.mxu0 0
        %471 = vmatprep.subr.bf16.mxu0 0
        %472 = vmatpush1.bf16.msra.mxu0 0
        %473 = vmatprep.subr.bf16.mxu0 0
        %474 = vmatpush1.bf16.msra.mxu0 0
        %475 = vmatprep.subr.bf16.mxu0 0
        %476 = vmatpush1.bf16.msra.mxu0 0
        %477 = vmatprep.subr.bf16.mxu0 0
        %478 = vmatpush1.bf16.msra.mxu0 0
        %479 = vmatprep.subr.bf16.mxu0 0
        %480 = vmatpush1.bf16.msra.mxu0 0
        %481 = vmatprep.mubr.bf16.mxu0 0
        %482 = vmatmul.mubr.bf16.gmra.mrb[0].mxu0 %v447
        %v483 = vpop.f32.mrb[0].mxu0
        %v484 = vadd.f32 %v426, %v483
        %v485 = vpop.f32.mrb[0].mxu0
        %v486 = vpop.f32.mrb[0].mxu0
        %v487 = vadd.f32 %v426, %v486
        %v488 = vpop.f32.mrb[0].mxu0
        %489 = vdwg.mxu0
        %v490 = vmax.f32 %v484, 0.0
        %v491 = vmax.f32 %v487, 0.0
        %v492 = vld [vmem:[%s4] sm:$0xf]
        %v493 = vld [vmem:[%s4 + $0x4] sm:$0xf]
        %v494 = vld [vmem:[%s4 + $0x8] sm:$0xf]
        %v495 = vld [vmem:[%s4 + $0xc] sm:$0xf]
        %v496 = vld [vmem:[%s5] sm:$0x1]
        %v498 = vlaneseq
        %v499 = vshrl.u32 %v498, 7
        %v500 = vsub.s32 0, %v499
        %v501 = vrot.slane %v496, %v500
        %v507 = vunpack.c.l.b16 %v492
        %v508 = vunpack.c.l.b16 %v493
        %v509 = vunpack.c.l.b16 %v494
        %v510 = vunpack.c.l.b16 %v495
        %v511 = vpack.c.b16 %v508, %v507
        %v512 = vpack.c.b16 %v510, %v509
        %v516 = vsel %vm445, %v416, 0
        %518 = vmatprep.subr.bf16.mxu0 0
        %519 = vmatpush1.bf16.msra.mxu0 %v511
        %520 = vmatprep.subr.bf16.mxu0 0
        %521 = vmatpush1.bf16.msra.mxu0 %v512
        %522 = vmatprep.subr.bf16.mxu0 0
        %523 = vmatpush1.bf16.msra.mxu0 0
        %524 = vmatprep.subr.bf16.mxu0 0
        %525 = vmatpush1.bf16.msra.mxu0 0
        %526 = vmatprep.subr.bf16.mxu0 0
        %527 = vmatpush1.bf16.msra.mxu0 0
        %528 = vmatprep.subr.bf16.mxu0 0
        %529 = vmatpush1.bf16.msra.mxu0 0
        %530 = vmatprep.subr.bf16.mxu0 0
        %531 = vmatpush1.bf16.msra.mxu0 0
        %532 = vmatprep.subr.bf16.mxu0 0
        %533 = vmatpush1.bf16.msra.mxu0 0
        %534 = vmatprep.subr.bf16.mxu0 0
        %535 = vmatpush1.bf16.msra.mxu0 0
        %536 = vmatprep.subr.bf16.mxu0 0
        %537 = vmatpush1.bf16.msra.mxu0 0
        %538 = vmatprep.subr.bf16.mxu0 0
        %539 = vmatpush1.bf16.msra.mxu0 0
        %540 = vmatprep.subr.bf16.mxu0 0
        %541 = vmatpush1.bf16.msra.mxu0 0
        %542 = vmatprep.subr.bf16.mxu0 0
        %543 = vmatpush1.bf16.msra.mxu0 0
        %544 = vmatprep.subr.bf16.mxu0 0
        %545 = vmatpush1.bf16.msra.mxu0 0
        %546 = vmatprep.subr.bf16.mxu0 0
        %547 = vmatpush1.bf16.msra.mxu0 0
        %548 = vmatprep.subr.bf16.mxu0 0
        %549 = vmatpush1.bf16.msra.mxu0 0
        %550 = vmatprep.mubr.bf16.mxu0 0
        %551 = vmatmul.mubr.bf16.gmra.mrb[0].mxu0 %v516
        %v552 = vpop.f32.mrb[0].mxu0
        %v553 = vadd.f32 %v501, %v552
        %v554 = vpop.f32.mrb[0].mxu0
        %v555 = vpop.f32.mrb[0].mxu0
        %v556 = vpop.f32.mrb[0].mxu0
        %557 = vdwg.mxu0
        %v558 = vmax.f32 %v553, 0.0
        %v559 = vld [vmem:[%s6] sm:$0x3]
        %v560 = vpack.c.bf16 %v491, %v490
        %v563 = vunpack.c.l.s4 1966171168
        %v564 = vunpack.c.0.s8 %v563
        %v565 = vlaneseq
        %v566 = vshrl.u32 %v565, 7
        %v567 = vsub.s32 %v564, %v566
        %v568 = vrot.slane %v559, %v567
        %v569 = vcombine.high %v568, %v568
        %v570 = vunpack.i.l.s16 %v568
        %v571 = vunpack.i.h.s16 %v568
        %v572 = vunpack.i.l.s16 %v569
        %v573 = vunpack.i.h.s16 %v569
        %v574 = vpack.i.b16 %v570, %v570
        %v575 = vpack.i.b16 %v571, %v571
        %v576 = vpack.i.b16 %v572, %v572
        %v577 = vpack.i.b16 %v573, %v573
        %v578 = vlaneseq
        %v579 = vshrl.u32 %v578, 7
        %v580 = vsub.s32 0, %v579
        %v581 = vrot.slane %v574, %v580
        %v582 = vlaneseq
        %v583 = vshrl.u32 %v582, 7
        %v584 = vsub.s32 0, %v583
        %v585 = vrot.slane %v575, %v584
        %v586 = vlaneseq
        %v587 = vshrl.u32 %v586, 7
        %v588 = vsub.s32 0, %v587
        %v589 = vrot.slane %v576, %v588
        %v590 = vlaneseq
        %v591 = vshrl.u32 %v590, 7
        %v592 = vsub.s32 0, %v591
        %v593 = vrot.slane %v577, %v592
        %v595 = vpack.i.b16 %v581, %v581
        %v597 = vlaneseq
        %v598 = vshrl.u32 %v597, 7
        %v599 = vsub.s32 0, %v598
        %v600 = vrot.slane %v595, %v599
        %v602 = vpack.i.b16 %v585, %v585
        %v604 = vlaneseq
        %v605 = vshrl.u32 %v604, 7
        %v606 = vsub.s32 0, %v605
        %v607 = vrot.slane %v602, %v606
        %v609 = vpack.i.b16 %v589, %v589
        %v611 = vlaneseq
        %v612 = vshrl.u32 %v611, 7
        %v613 = vsub.s32 0, %v612
        %v614 = vrot.slane %v609, %v613
        %v616 = vpack.i.b16 %v593, %v593
        %v618 = vlaneseq
        %v619 = vshrl.u32 %v618, 7
        %v620 = vsub.s32 0, %v619
        %v621 = vrot.slane %v616, %v620
        %v622 = vmul.bf16 %v560, %v600
        %v623 = vmul.bf16 %v560, %v607
        %v624 = vmul.bf16 %v560, %v614
        %v625 = vmul.bf16 %v560, %v621
        %v626 = vpack.c.bf16 %v558, %v558
        %627 = vmatprep.subr.bf16.mxu0 0
        %628 = vmatpush1.bf16.xpose.msra.mxu0 %v626
        %629 = vmatprep.subr.bf16.mxu0 0
        %630 = vmatpush1.bf16.xpose.msra.mxu0 0
        %631 = vmatprep.subr.bf16.mxu0 0
        %632 = vmatpush1.bf16.xpose.msra.mxu0 0
        %633 = vmatprep.subr.bf16.mxu0 0
        %634 = vmatpush1.bf16.xpose.msra.mxu0 0
        %635 = vmatprep.subr.bf16.mxu0 0
        %636 = vmatpush1.bf16.xpose.msra.mxu0 0
        %637 = vmatprep.subr.bf16.mxu0 0
        %638 = vmatpush1.bf16.xpose.msra.mxu0 0
        %639 = vmatprep.subr.bf16.mxu0 0
        %640 = vmatpush1.bf16.xpose.msra.mxu0 0
        %641 = vmatprep.subr.bf16.mxu0 0
        %642 = vmatpush1.bf16.xpose.msra.mxu0 0
        %643 = vmatprep.subr.bf16.mxu0 0
        %644 = vmatpush1.bf16.xpose.msra.mxu0 0
        %645 = vmatprep.subr.bf16.mxu0 0
        %646 = vmatpush1.bf16.xpose.msra.mxu0 0
        %647 = vmatprep.subr.bf16.mxu0 0
        %648 = vmatpush1.bf16.xpose.msra.mxu0 0
        %649 = vmatprep.subr.bf16.mxu0 0
        %650 = vmatpush1.bf16.xpose.msra.mxu0 0
        %651 = vmatprep.subr.bf16.mxu0 0
        %652 = vmatpush1.bf16.xpose.msra.mxu0 0
        %653 = vmatprep.subr.bf16.mxu0 0
        %654 = vmatpush1.bf16.xpose.msra.mxu0 0
        %655 = vmatprep.subr.bf16.mxu0 0
        %656 = vmatpush1.bf16.xpose.msra.mxu0 0
        %657 = vmatprep.subr.bf16.mxu0 0
        %658 = vmatpush1.bf16.xpose.msra.mxu0 0
        %659 = vmatprep.mubr.bf16.mxu0 0
        %660 = vmatmul.mubr.bf16.gmra.mrb[0].mxu0 %v622
        %v661 = vpop.f32.mrb[0].mxu0
        %v662 = vadd.f32 0.0, %v661
        %v663 = vpop.f32.mrb[0].mxu0
        %v664 = vpop.f32.mrb[0].mxu0
        %v665 = vadd.f32 0.0, %v664
        %v666 = vpop.f32.mrb[0].mxu0
        %667 = vmatprep.mubr.bf16.mxu0 0
        %668 = vmatmul.mubr.bf16.gmra.mrb[0].mxu0 %v623
        %v669 = vpop.f32.mrb[0].mxu0
        %v670 = vadd.f32 0.0, %v669
        %v671 = vpop.f32.mrb[0].mxu0
        %v672 = vpop.f32.mrb[0].mxu0
        %v673 = vadd.f32 0.0, %v672
        %v674 = vpop.f32.mrb[0].mxu0
        %675 = vmatprep.mubr.bf16.mxu0 0
        %676 = vmatmul.mubr.bf16.gmra.mrb[0].mxu0 %v624
        %v677 = vpop.f32.mrb[0].mxu0
        %v678 = vadd.f32 0.0, %v677
        %v679 = vpop.f32.mrb[0].mxu0
        %v680 = vpop.f32.mrb[0].mxu0
        %v681 = vadd.f32 0.0, %v680
        %v682 = vpop.f32.mrb[0].mxu0
        %683 = vmatprep.mubr.bf16.mxu0 0
        %684 = vmatmul.mubr.bf16.gmra.mrb[0].mxu0 %v625
        %v685 = vpop.f32.mrb[0].mxu0
        %v686 = vadd.f32 0.0, %v685
        %v687 = vpop.f32.mrb[0].mxu0
        %v688 = vpop.f32.mrb[0].mxu0
        %v689 = vadd.f32 0.0, %v688
        %v690 = vpop.f32.mrb[0].mxu0
        %691 = vdwg.mxu0
        %v692 = vld [vmem:[%s7] sm:$0xf]
        %v695 = vunpack.c.l.s4 1966171168
        %v696 = vunpack.c.0.s8 %v695
        %v697 = vlaneseq
        %v698 = vshrl.u32 %v697, 7
        %v699 = vsub.s32 %v696, %v698
        %v700 = vrot.slane %v692, %v699
        %v701 = vcombine.high %v700, %v700
        %v703 = vunpack.c.l.s4 1966171168
        %v704 = vunpack.c.0.s8 %v703
        %v705 = vlaneseq
        %v706 = vshrl.u32 %v705, 7
        %v707 = vsub.s32 %v704, %v706
        %v708 = vrot.slane %v700, %v707
        %v710 = vunpack.c.l.s4 1966171168
        %v711 = vunpack.c.0.s8 %v710
        %v712 = vlaneseq
        %v713 = vshrl.u32 %v712, 7
        %v714 = vsub.s32 %v711, %v713
        %v715 = vrot.slane %v701, %v714
        %v716 = vcombine.high %v708, %v708
        %v717 = vcombine.high %v715, %v715
        %v718 = vlaneseq
        %v719 = vshrl.u32 %v718, 7
        %v720 = vsub.s32 0, %v719
        %v721 = vrot.slane %v708, %v720
        %v722 = vlaneseq
        %v723 = vshrl.u32 %v722, 7
        %v724 = vsub.s32 0, %v723
        %v725 = vrot.slane %v715, %v724
        %v726 = vlaneseq
        %v727 = vshrl.u32 %v726, 7
        %v728 = vsub.s32 0, %v727
        %v729 = vrot.slane %v716, %v728
        %v730 = vlaneseq
        %v731 = vshrl.u32 %v730, 7
        %v732 = vsub.s32 0, %v731
        %v733 = vrot.slane %v717, %v732
        %734 = vset.pattern.permute.xlu0 0
        %735 = vperm.xlu0 %734, %v721
        %v736 = vpop.permute.xlu0 %735
        %738 = vset.pattern.permute.xlu0 0
        %739 = vperm.xlu0 %738, %v725
        %v740 = vpop.permute.xlu0 %739
        %742 = vset.pattern.permute.xlu0 0
        %743 = vperm.xlu0 %742, %v729
        %v744 = vpop.permute.xlu0 %743
        %746 = vset.pattern.permute.xlu0 0
        %747 = vperm.xlu0 %746, %v733
        %v748 = vpop.permute.xlu0 %747
        %v750 = vadd.f32 %v662, %v736
        %v751 = vadd.f32 %v665, %v736
        %v752 = vadd.f32 %v670, %v740
        %v753 = vadd.f32 %v673, %v740
        %v754 = vadd.f32 %v678, %v744
        %v755 = vadd.f32 %v681, %v744
        %v756 = vadd.f32 %v686, %v748
        %v757 = vadd.f32 %v689, %v748
        %v758 = vand.u32 2147450879, %v414
        %v759 = vand.u32 2147450879, %v415
        %v760 = vunpack.c.l.bf16 %v758
        %v761 = vunpack.c.l.bf16 %v759
        %v762 = vsel %vm445, %v760, 0.0
        %763 = vadd.xlane.f32.xlu0 %v762
        %v764 = vpop.xlane.xlu0 %763
        %v765 = vsel %vm445, %v761, 0.0
        %766 = vadd.xlane.f32.xlu0 %v765
        %v767 = vpop.xlane.xlu0 %766
        %vm768 = vcmp.eq.f32.partialorder %v764, 0.0
        %vm769 = vcmp.eq.f32.partialorder %v767, 0.0
        %v770 = vsel %vm768, 1, 0
        %v771 = vsel %vm769, 1, 0
        %vm772 = vcmp.eq.s32.totalorder %v770, 1
        %vm773 = vcmp.eq.s32.totalorder %v771, 1
        %v774 = vsel %vm772, -inf, %v750
        %v775 = vsel %vm773, -inf, %v751
        %v776 = vsel %vm772, -inf, %v752
        %v777 = vsel %vm773, -inf, %v753
        %v778 = vsel %vm772, -inf, %v754
        %v779 = vsel %vm773, -inf, %v755
        %v780 = vsel %vm772, -inf, %v756
        %v781 = vsel %vm773, -inf, %v757
        %v782 = vcombine.low %v774, %v778
        %v783 = vcombine.high %v774, %v778
        %v785 = vunpack.c.l.s4 1983009808
        %v786 = vunpack.c.0.s8 %v785
        %v787 = vlaneseq
        %v788 = vshrl.u32 %v787, 7
        %v789 = vsub.s32 %v786, %v788
        %v790 = vrot.slane %v782, %v789
        %v792 = vunpack.c.l.s4 1983009808
        %v793 = vunpack.c.0.s8 %v792
        %v794 = vlaneseq
        %v795 = vshrl.u32 %v794, 7
        %v796 = vsub.s32 %v793, %v795
        %v797 = vrot.slane %v783, %v796
        %v798 = vcombine.low %v776, %v780
        %v799 = vcombine.high %v776, %v780
        %v801 = vunpack.c.l.s4 1983009808
        %v802 = vunpack.c.0.s8 %v801
        %v803 = vlaneseq
        %v804 = vshrl.u32 %v803, 7
        %v805 = vsub.s32 %v802, %v804
        %v806 = vrot.slane %v798, %v805
        %v808 = vunpack.c.l.s4 1983009808
        %v809 = vunpack.c.0.s8 %v808
        %v810 = vlaneseq
        %v811 = vshrl.u32 %v810, 7
        %v812 = vsub.s32 %v809, %v811
        %v813 = vrot.slane %v799, %v812
        %v814 = vcombine.low %v790, %v806
        %v815 = vcombine.high %v790, %v806
        %v817 = vunpack.c.l.s4 1934713408
        %v818 = vunpack.c.0.s8 %v817
        %v819 = vlaneseq
        %v820 = vshrl.u32 %v819, 7
        %v821 = vsub.s32 %v818, %v820
        %v822 = vrot.slane %v814, %v821
        %v824 = vunpack.c.l.s4 1934713408
        %v825 = vunpack.c.0.s8 %v824
        %v826 = vlaneseq
        %v827 = vshrl.u32 %v826, 7
        %v828 = vsub.s32 %v825, %v827
        %v829 = vrot.slane %v815, %v828
        %v830 = vcombine.low %v797, %v813
        %v831 = vcombine.high %v797, %v813
        %v833 = vunpack.c.l.s4 1934713408
        %v834 = vunpack.c.0.s8 %v833
        %v835 = vlaneseq
        %v836 = vshrl.u32 %v835, 7
        %v837 = vsub.s32 %v834, %v836
        %v838 = vrot.slane %v830, %v837
        %v840 = vunpack.c.l.s4 1934713408
        %v841 = vunpack.c.0.s8 %v840
        %v842 = vlaneseq
        %v843 = vshrl.u32 %v842, 7
        %v844 = vsub.s32 %v841, %v843
        %v845 = vrot.slane %v831, %v844
        %v846 = vcombine.high %v822, 0.0
        %v847 = vcombine.high %v829, 0.0
        %v848 = vcombine.high %v838, 0.0
        %v849 = vcombine.high %v845, 0.0
        %v850 = vcombine.low %v775, %v779
        %v851 = vcombine.high %v775, %v779
        %v853 = vunpack.c.l.s4 1983009808
        %v854 = vunpack.c.0.s8 %v853
        %v855 = vlaneseq
        %v856 = vshrl.u32 %v855, 7
        %v857 = vsub.s32 %v854, %v856
        %v858 = vrot.slane %v850, %v857
        %v860 = vunpack.c.l.s4 1983009808
        %v861 = vunpack.c.0.s8 %v860
        %v862 = vlaneseq
        %v863 = vshrl.u32 %v862, 7
        %v864 = vsub.s32 %v861, %v863
        %v865 = vrot.slane %v851, %v864
        %v866 = vcombine.low %v777, %v781
        %v867 = vcombine.high %v777, %v781
        %v869 = vunpack.c.l.s4 1983009808
        %v870 = vunpack.c.0.s8 %v869
        %v871 = vlaneseq
        %v872 = vshrl.u32 %v871, 7
        %v873 = vsub.s32 %v870, %v872
        %v874 = vrot.slane %v866, %v873
        %v876 = vunpack.c.l.s4 1983009808
        %v877 = vunpack.c.0.s8 %v876
        %v878 = vlaneseq
        %v879 = vshrl.u32 %v878, 7
        %v880 = vsub.s32 %v877, %v879
        %v881 = vrot.slane %v867, %v880
        %v882 = vcombine.low %v858, %v874
        %v883 = vcombine.high %v858, %v874
        %v885 = vunpack.c.l.s4 1934713408
        %v886 = vunpack.c.0.s8 %v885
        %v887 = vlaneseq
        %v888 = vshrl.u32 %v887, 7
        %v889 = vsub.s32 %v886, %v888
        %v890 = vrot.slane %v882, %v889
        %v892 = vunpack.c.l.s4 1934713408
        %v893 = vunpack.c.0.s8 %v892
        %v894 = vlaneseq
        %v895 = vshrl.u32 %v894, 7
        %v896 = vsub.s32 %v893, %v895
        %v897 = vrot.slane %v883, %v896
        %v898 = vcombine.low %v865, %v881
        %v899 = vcombine.high %v865, %v881
        %v901 = vunpack.c.l.s4 1934713408
        %v902 = vunpack.c.0.s8 %v901
        %v903 = vlaneseq
        %v904 = vshrl.u32 %v903, 7
        %v905 = vsub.s32 %v902, %v904
        %v906 = vrot.slane %v898, %v905
        %v908 = vunpack.c.l.s4 1934713408
        %v909 = vunpack.c.0.s8 %v908
        %v910 = vlaneseq
        %v911 = vshrl.u32 %v910, 7
        %v912 = vsub.s32 %v909, %v911
        %v913 = vrot.slane %v899, %v912
        %v914 = vcombine.high %v890, 0.0
        %v915 = vcombine.high %v897, 0.0
        %v916 = vcombine.high %v906, 0.0
        %v917 = vcombine.high %v913, 0.0
        %919 = vrot.lane.b32.xlu0 %v846, 8
        %v920 = vpop.permute.xlu0 %919
        %923 = vrot.lane.b32.xlu0 %v829, 16
        %v924 = vpop.permute.xlu0 %923
        %927 = vrot.lane.b32.xlu0 %v847, 24
        %v928 = vpop.permute.xlu0 %927
        %931 = vrot.lane.b32.xlu0 %v838, 32
        %v932 = vpop.permute.xlu0 %931
        %935 = vrot.lane.b32.xlu0 %v848, 40
        %v936 = vpop.permute.xlu0 %935
        %939 = vrot.lane.b32.xlu0 %v845, 48
        %v940 = vpop.permute.xlu0 %939
        %943 = vrot.lane.b32.xlu0 %v849, 56
        %v944 = vpop.permute.xlu0 %943
        %947 = vrot.lane.b32.xlu0 %v890, 64
        %v948 = vpop.permute.xlu0 %947
        %951 = vrot.lane.b32.xlu0 %v914, 72
        %v952 = vpop.permute.xlu0 %951
        %955 = vrot.lane.b32.xlu0 %v897, 80
        %v956 = vpop.permute.xlu0 %955
        %959 = vrot.lane.b32.xlu0 %v915, 88
        %v960 = vpop.permute.xlu0 %959
        %963 = vrot.lane.b32.xlu0 %v906, 96
        %v964 = vpop.permute.xlu0 %963
        %967 = vrot.lane.b32.xlu0 %v916, 104
        %v968 = vpop.permute.xlu0 %967
        %971 = vrot.lane.b32.xlu0 %v913, 112
        %v972 = vpop.permute.xlu0 %971
        %975 = vrot.lane.b32.xlu0 %v917, 120
        %v976 = vpop.permute.xlu0 %975
        %vm978 = vcmask 64512
        %v979 = vsel %vm978, %v822, %v920
        %vm980 = vcmask 130048
        %v981 = vsel %vm980, %v979, %v924
        %vm982 = vcmask 195584
        %v983 = vsel %vm982, %v981, %v928
        %v984 = vsel %vm445, %v983, %v932
        %vm985 = vcmask 326656
        %v986 = vsel %vm985, %v984, %v936
        %vm987 = vcmask 392192
        %v988 = vsel %vm987, %v986, %v940
        %vm989 = vcmask 457728
        %v990 = vsel %vm989, %v988, %v944
        %vm991 = vcmask 523264
        %v992 = vsel %vm991, %v990, %v948
        %vm993 = vcmask 588800
        %v994 = vsel %vm993, %v992, %v952
        %vm995 = vcmask 654336
        %v996 = vsel %vm995, %v994, %v956
        %vm997 = vcmask 719872
        %v998 = vsel %vm997, %v996, %v960
        %vm999 = vcmask 785408
        %v1000 = vsel %vm999, %v998, %v964
        %vm1001 = vcmask 850944
        %v1002 = vsel %vm1001, %v1000, %v968
        %vm1003 = vcmask 916480
        %v1004 = vsel %vm1003, %v1002, %v972
        %vm1005 = vcmask 982016
        %v1006 = vsel %vm1005, %v1004, %v976
        %1007 = vst [vmem:[%s412] sm:$0xf] %v1006
        %vm1008 = vcmask 1043456
        %v1009 = vsel %vm1008, %v1006, -inf
        %1010 = vmax.xlane.f32.xlu0 %v1009
        %v1011 = vpop.xlane.xlu0 %1010
        %v1012 = vsub.f32 %v1006, %v1011
        %v1013 = vmul.f32 %v1012, 1.442695
        %v1014 = vpow.pop %v1013
        %v1015 = vsel %vm1008, %v1014, 0.0
        %1016 = vadd.xlane.f32.xlu0 %v1015
        %v1017 = vpop.xlane.xlu0 %1016
        %v1018 = vrcp.pop %v1017
        %v1019 = vmul.f32 %v1014, %v1018
        %1020 = vst [vmem:[%s405] sm:$0xf] %v1019
        %s1021 = sand.u32 %s219, 1
        %s1022 = scalar_lea.sflag [#allocation4], %s1021
        %s1023 = sand.u32 %s219, 1
        %s1024 = smul.addr %s1023, 4
        %s1025 = scalar_lea.vmem [#allocation8], %s1024
        %s1026 = sand.u32 %s245, 1
        %s1027 = scalar_lea.sflag [#allocation10], %s1026
        %s1028 = sand.u32 %s245, 1
        %s1029 = smul.addr %s1028, 4
        %s1030 = scalar_lea.vmem [#allocation9], %s1029
        // Predicated region
        $region65: #{tpu_custom_call.1} parent=51 // pred_check
          %p1031 = pneg %p229
        $region66: #{tpu_custom_call.1} parent=51 // pred_check_branch
          %1033 = sbr.rel (%p1031) target = $region68
        $region67: #{tpu_custom_call.1} parent=51 // pred_region
          %s1035 = ssub.s32 64, 64
          %1036 = vsyncadd %s1022, %s1035
          %s1037 = smul.addr %s33, 64
          %s1038 = scalar_lea.hbm %s8, %s1037
          %s1040 = sshll.u32 %s1025, 4
          %s1041 = int_to_ptr.vmem [resolvable:$true] %s1040
          %1043 = dma.vmem_to_hbm [thread:$0]  %s1041, 64, %s1038, %s1022
        $region68: #{tpu_custom_call.1} parent=51 // pred_fallthru
          _
        // Predicated region
        $region69: #{tpu_custom_call.1} parent=51 // pred_check
          %p1044 = pneg %p255
        $region70: #{tpu_custom_call.1} parent=51 // pred_check_branch
          %1046 = sbr.rel (%p1044) target = $region72
        $region71: #{tpu_custom_call.1} parent=51 // pred_region
          %s1048 = ssub.s32 64, 64
          %1049 = vsyncadd %s1027, %s1048
          %s1050 = smul.addr %s33, 64
          %s1051 = scalar_lea.hbm %s9, %s1050
          %s1053 = sshll.u32 %s1030, 4
          %s1054 = int_to_ptr.vmem [resolvable:$true] %s1053
          %1056 = dma.vmem_to_hbm [thread:$0]  %s1054, 64, %s1051, %s1027
        $region72: #{tpu_custom_call.1} parent=51 // pred_fallthru
          _
      $region52: #{tpu_custom_call.1} parent=5 // pred_fallthru
        _
      %p1057 = scmp.le.s32.totalorder 2, %s28
      // Predicated region
      $region73: #{tpu_custom_call.1} parent=5 // pred_check
        %p1058 = pneg %p1057
      $region74: #{tpu_custom_call.1} parent=5 // pred_check_branch
        %1060 = sbr.rel (%p1058) target = $region76
      $region75: #{tpu_custom_call.1} parent=5 // pred_region
        %s1061 = ssub.s32 %s28, 2
        // Predicated region
        $region77: #{tpu_custom_call.1} parent=75 // pred_check
          %p1062 = pneg %p235
        $region78: #{tpu_custom_call.1} parent=75 // pred_check_branch
          %1064 = sbr.rel (%p1062) target = $region80
        $region79: #{tpu_custom_call.1} parent=75 // pred_region
          %s1065 = sand.u32 %s220, 1
          %s1066 = scalar_lea.sflag [#allocation4], %s1065
          %s1067 = sand.u32 %s220, 1
          %s1068 = smul.addr %s1067, 4
          %s1069 = scalar_lea.vmem [#allocation8], %s1068
          %1070 = dma.done %s1066, 64
        $region80: #{tpu_custom_call.1} parent=75 // pred_fallthru
          _
        // Predicated region
        $region81: #{tpu_custom_call.1} parent=75 // pred_check
          %p1071 = pneg %p261
        $region82: #{tpu_custom_call.1} parent=75 // pred_check_branch
          %1073 = sbr.rel (%p1071) target = $region84
        $region83: #{tpu_custom_call.1} parent=75 // pred_region
          %s1074 = sand.u32 %s246, 1
          %s1075 = scalar_lea.sflag [#allocation10], %s1074
          %s1076 = sand.u32 %s246, 1
          %s1077 = smul.addr %s1076, 4
          %s1078 = scalar_lea.vmem [#allocation9], %s1077
          %1079 = dma.done %s1075, 64
        $region84: #{tpu_custom_call.1} parent=75 // pred_fallthru
          _
      $region76: #{tpu_custom_call.1} parent=5 // pred_fallthru
        _
    $region6: #{tpu_custom_call.1} parent=1 // loop_footer
      %s32 = sadd.s32 1, %s28
    $region7: #{tpu_custom_call.1} parent=1 // loop_footer_branch
      %27 = sbr.rel target = $region3
    $region8: #{tpu_custom_call.1} parent=1 // loop_exit
      _
    %1080 = vsyncpa [#allocation3], 1
    %s1081 = scalar_lea.sflag [#allocation3], 1
    %1082 = vsyncpa %s1081, 1
    %1083 = vsyncpa [#allocation6], 1
    %s1084 = scalar_lea.sflag [#allocation6], 1
    %1085 = vsyncpa %s1084, 1
    %1086 = vsyncpa [#allocation4], 1
    %s1087 = scalar_lea.sflag [#allocation4], 1
    %1088 = vsyncpa %s1087, 1
    %1089 = vsyncpa [#allocation10], 1
    %s1090 = scalar_lea.sflag [#allocation10], 1
    %1091 = vsyncpa %s1090, 1

</llo_original>
